<compile_context>
chip_gen: v6e
topology: v6e:2x2x1
jax: 0.10.0
libtpu: 0.0.40
codegen_flags: <defaults>
</compile_context>

<pallas_src>
import functools

import jax
import jax.numpy as jnp
from jax.experimental import pallas as pl
from jax.experimental.pallas import tpu as pltpu


def _layer_norm_nct_kernel(x_ref, gamma_ref, beta_ref, o_ref, *, eps, inv_c):
    # x_ref: (C, tile_T) block — channels on sublanes, time on lanes.
    x = x_ref[...].astype(jnp.float32)

    # One-pass statistics over the channel (sublane) axis.
    s1 = jnp.sum(x, axis=0, keepdims=True)            # (1, tile_T)
    s2 = jnp.sum(x * x, axis=0, keepdims=True)        # (1, tile_T)
    mean = s1 * inv_c
    var = jnp.maximum(s2 * inv_c - mean * mean, 0.0)   # biased, like F.layer_norm
    inv_std = jax.lax.rsqrt(var + eps)                 # (1, tile_T)

    gamma = gamma_ref[...].astype(jnp.float32)         # (C, 1)
    beta = beta_ref[...].astype(jnp.float32)           # (C, 1)

    # Apply in a single pass; re-read the block rather than holding `centered`.
    xr = x_ref[...].astype(jnp.float32)
    o_ref[...] = ((xr - mean) * inv_std * gamma + beta).astype(o_ref.dtype)


def _plan_tiles(B, C, T, itemsize, vmem_budget_bytes):
    """Pick tile_t (lane-aligned multiple of 128, or full T) so the whole
    per-step VMEM working set fits the budget, and derive vmem_limit_bytes."""
    c_pad = ((C + 7) // 8) * 8
    # Per tile_t column: in+out blocks double-buffered at I/O dtype, plus ~3
    # full-tile f32 temporaries the kernel materializes (x_f32, x*x, y).
    per_col = c_pad * (2 * 2 * itemsize + 3 * 4)
    # tile_t-independent: gamma/beta (C,1) lane-pad to (c_pad,128) f32, x2 buffers.
    fixed = 2 * 2 * c_pad * 128 * 4

    cols_budget = max(vmem_budget_bytes - fixed, per_col * 128)
    cols = max(128, (cols_budget // per_col) // 128 * 128)

    if T <= cols:
        tile_t = T  # full-T block: the 128-lane divisibility rule does not apply
        # v7x megacore balance: avoid a 1-step grid when B == 1.
        if B == 1 and T > 128:
            half = (((T + 1) // 2) + 127) // 128 * 128
            tile_t = min(half, cols)
    else:
        tile_t = cols

    need = fixed + per_col * tile_t
    vmem_limit = int(min(max(need + (2 << 20), 32 << 20), 48 << 20))
    return int(tile_t), vmem_limit


def _layer_norm_nct_xla(x, gamma, beta, eps):
    # Plain-XLA fallback for tiny T (lane under-utilization + fixed kernel cost).
    xf = x.astype(jnp.float32)
    mean = jnp.mean(xf, axis=1, keepdims=True)
    var = jnp.mean((xf - mean) ** 2, axis=1, keepdims=True)
    y = (xf - mean) * jax.lax.rsqrt(var + eps)
    y = y * gamma.reshape(1, -1, 1).astype(jnp.float32) \
          + beta.reshape(1, -1, 1).astype(jnp.float32)
    return y.astype(x.dtype)


def layer_norm_nct(x, gamma, beta, *, eps=1e-5, vmem_budget_bytes=40 << 20):
    """x: (B, C, T). Returns (B, C, T), layer-normalized over C.

    Matches: x.transpose(1,-1); F.layer_norm(x, (C,), gamma, beta, eps); transpose back.
    """
    B, C, T = x.shape

    if T < 128:
        # Small-T escape hatch: let XLA handle it (fuse-able, no pallas fixed cost).
        return _layer_norm_nct_xla(x, gamma, beta, eps)

    itemsize = jnp.dtype(x.dtype).itemsize
    tile_t, vmem_limit = _plan_tiles(B, C, T, itemsize, vmem_budget_bytes)
    grid_t = pl.cdiv(T, tile_t)  # ragged last tile OK: Pallas masks boundary writes

    gamma_c1 = gamma.reshape(C, 1)
    beta_c1 = beta.reshape(C, 1)

    kernel = functools.partial(_layer_norm_nct_kernel, eps=eps, inv_c=1.0 / C)

    return pl.pallas_call(
        kernel,
        out_shape=jax.ShapeDtypeStruct((B, C, T), x.dtype),
        grid_spec=pltpu.PrefetchScalarGridSpec(
            num_scalar_prefetch=0,
            grid=(B, grid_t),
            in_specs=[
                # batch dim squeezed out (None); kernel sees a (C, tile_T) tile.
                pl.BlockSpec((None, C, tile_t), lambda b, t: (b, 0, t)),
                pl.BlockSpec((C, 1), lambda b, t: (0, 0)),   # gamma: constant block
                pl.BlockSpec((C, 1), lambda b, t: (0, 0)),   # beta:  constant block
            ],
            out_specs=pl.BlockSpec((None, C, tile_t), lambda b, t: (b, 0, t)),
        ),
        compiler_params=pltpu.CompilerParams(
            dimension_semantics=("parallel", "parallel"),
            vmem_limit_bytes=vmem_limit),
    )(x, gamma_c1, beta_c1)


def _reference(x, gamma, beta, eps=1e-5):
    xt = jnp.transpose(x, (0, 2, 1)).astype(jnp.float32)
    mean = jnp.mean(xt, axis=-1, keepdims=True)
    var = jnp.mean((xt - mean) ** 2, axis=-1, keepdims=True)
    y = (xt - mean) / jnp.sqrt(var + eps) * gamma + beta
    return jnp.transpose(y, (0, 2, 1)).astype(x.dtype)


if __name__ == "__main__":
    # Case 1: canonical tiny shape from the text-encoder module (B, C, T).
    # T < 128 -> takes the XLA fallback path on purpose.
    key = jax.random.PRNGKey(0)
    B, C, T = 2, 32, 8
    x = jax.random.normal(key, (B, C, T), dtype=jnp.float32)
    gamma = jnp.ones((C,), dtype=jnp.float32)   # module __init__ defaults
    beta = jnp.zeros((C,), dtype=jnp.float32)
    out = jax.block_until_ready(layer_norm_nct(x, gamma, beta, eps=1e-5))
    ref = _reference(x, gamma, beta, eps=1e-5)
    assert out.shape == (B, C, T)
    assert jnp.allclose(out, ref, atol=1e-4, rtol=1e-4)

    # Case 2: kernel path with non-trivial gamma/beta and a ragged T tiling
    # (small vmem budget forces tile_t=128 -> grid over T with a masked final
    # tile), exercising the cdiv boundary path.
    k1, k2, k3 = jax.random.split(jax.random.PRNGKey(0), 3)
    B2, C2, T2 = 2, 64, 200
    x2 = jax.random.normal(k1, (B2, C2, T2), dtype=jnp.float32)
    gamma2 = jax.random.normal(k2, (C2,), dtype=jnp.float32)
    beta2 = jax.random.normal(k3, (C2,), dtype=jnp.float32)
    out2 = jax.block_until_ready(
        layer_norm_nct(x2, gamma2, beta2, eps=1e-5, vmem_budget_bytes=256 << 10))
    ref2 = _reference(x2, gamma2, beta2, eps=1e-5)
    assert out2.shape == (B2, C2, T2)
    assert jnp.allclose(out2, ref2, atol=1e-4, rtol=1e-4)

    # Case 3: B == 1 (exercises the megacore T-split: grid_t >= 2) with C not a
    # multiple of 8 (relies on Mosaic masking padded sublanes in the reduce).
    k4, k5, k6 = jax.random.split(jax.random.PRNGKey(1), 3)
    B3, C3, T3 = 1, 20, 384
    x3 = jax.random.normal(k4, (B3, C3, T3), dtype=jnp.float32)
    gamma3 = jax.random.normal(k5, (C3,), dtype=jnp.float32)
    beta3 = jax.random.normal(k6, (C3,), dtype=jnp.float32)
    out3 = jax.block_until_ready(layer_norm_nct(x3, gamma3, beta3, eps=1e-5))
    ref3 = _reference(x3, gamma3, beta3, eps=1e-5)
    assert out3.shape == (B3, C3, T3)
    assert jnp.allclose(out3, ref3, atol=1e-4, rtol=1e-4)

    print("KERNEL_OK")
</pallas_src>

<mosaic_0001>
module attributes {stable_mosaic.version = 11 : i64} {
  func.func @_layer_norm_nct_kernel(%arg0: i32, %arg1: i32, %arg2: memref<1x64x128xf32, #tpu.memory_space<vmem>>, %arg3: memref<64x1xf32, #tpu.memory_space<vmem>>, %arg4: memref<64x1xf32, #tpu.memory_space<vmem>>, %arg5: memref<1x64x128xf32, #tpu.memory_space<vmem>>) attributes {dimension_semantics = [#tpu.dimension_semantics<parallel>, #tpu.dimension_semantics<parallel>], iteration_bounds = array<i64: 2, 2>, scalar_prefetch = 0 : i64, scratch_operands = 0 : i64, tpu.core_type = #tpu.core_type<tc>, window_params = [{transform_indices = @transform_0, window_bounds = array<i64: 1, 64, 128>}, {pipeline_mode = #tpu.pipeline_mode<synchronous>, transform_indices = @transform_1, window_bounds = array<i64: 64, 1>}, {pipeline_mode = #tpu.pipeline_mode<synchronous>, transform_indices = @transform_2, window_bounds = array<i64: 64, 1>}, {transform_indices = @transform_3, window_bounds = array<i64: 1, 64, 128>}]} {
    %c0 = arith.constant 0 : index
    %c0_0 = arith.constant 0 : index
    %c0_1 = arith.constant 0 : index
    %0 = vector.load %arg2[%c0, %c0_0, %c0_1] : memref<1x64x128xf32, #tpu.memory_space<vmem>>, vector<1x64x128xf32>
    %1 = vector.shape_cast %0 : vector<1x64x128xf32> to vector<64x128xf32>
    %cst = arith.constant dense<0.000000e+00> : vector<128xf32>
    %2 = vector.multi_reduction <add>, %1, %cst [0] : vector<64x128xf32> to vector<128xf32>
    %3 = vector.shape_cast %2 : vector<128xf32> to vector<1x128xf32>
    %4 = arith.mulf %1, %1 : vector<64x128xf32>
    %cst_2 = arith.constant dense<0.000000e+00> : vector<128xf32>
    %5 = vector.multi_reduction <add>, %4, %cst_2 [0] : vector<64x128xf32> to vector<128xf32>
    %6 = vector.shape_cast %5 : vector<128xf32> to vector<1x128xf32>
    %cst_3 = arith.constant 1.562500e-02 : f32
    %7 = vector.broadcast %cst_3 : f32 to vector<1x128xf32>
    %8 = arith.mulf %3, %7 : vector<1x128xf32>
    %cst_4 = arith.constant 1.562500e-02 : f32
    %9 = vector.broadcast %cst_4 : f32 to vector<1x128xf32>
    %10 = arith.mulf %6, %9 : vector<1x128xf32>
    %11 = arith.mulf %8, %8 : vector<1x128xf32>
    %12 = arith.subf %10, %11 : vector<1x128xf32>
    %cst_5 = arith.constant 0.000000e+00 : f32
    %13 = vector.broadcast %cst_5 : f32 to vector<1x128xf32>
    %14 = arith.maximumf %12, %13 : vector<1x128xf32>
    %cst_6 = arith.constant 9.99999974E-6 : f32
    %15 = vector.broadcast %cst_6 : f32 to vector<1x128xf32>
    %16 = arith.addf %14, %15 : vector<1x128xf32>
    %17 = math.rsqrt %16 : vector<1x128xf32>
    %c0_7 = arith.constant 0 : index
    %c0_8 = arith.constant 0 : index
    %18 = vector.load %arg3[%c0_7, %c0_8] : memref<64x1xf32, #tpu.memory_space<vmem>>, vector<64x1xf32>
    %c0_9 = arith.constant 0 : index
    %c0_10 = arith.constant 0 : index
    %19 = vector.load %arg4[%c0_9, %c0_10] : memref<64x1xf32, #tpu.memory_space<vmem>>, vector<64x1xf32>
    %c0_11 = arith.constant 0 : index
    %c0_12 = arith.constant 0 : index
    %c0_13 = arith.constant 0 : index
    %20 = vector.load %arg2[%c0_11, %c0_12, %c0_13] : memref<1x64x128xf32, #tpu.memory_space<vmem>>, vector<1x64x128xf32>
    %21 = vector.shape_cast %20 : vector<1x64x128xf32> to vector<64x128xf32>
    %22 = vector.broadcast %8 : vector<1x128xf32> to vector<64x128xf32>
    %23 = arith.subf %21, %22 : vector<64x128xf32>
    %24 = vector.broadcast %17 : vector<1x128xf32> to vector<64x128xf32>
    %25 = arith.mulf %23, %24 : vector<64x128xf32>
    %26 = vector.broadcast %18 : vector<64x1xf32> to vector<64x128xf32>
    %27 = arith.mulf %25, %26 : vector<64x128xf32>
    %28 = vector.broadcast %19 : vector<64x1xf32> to vector<64x128xf32>
    %29 = arith.addf %27, %28 : vector<64x128xf32>
    %c0_14 = arith.constant 0 : index
    %c0_15 = arith.constant 0 : index
    %c0_16 = arith.constant 0 : index
    %30 = vector.load %arg5[%c0_14, %c0_15, %c0_16] : memref<1x64x128xf32, #tpu.memory_space<vmem>>, vector<1x64x128xf32>
    %31 = vector.shape_cast %30 : vector<1x64x128xf32> to vector<64x128xf32>
    %32 = vector.shape_cast %29 : vector<64x128xf32> to vector<1x64x128xf32>
    tpu.vector_store %arg5[%c0_14, %c0_15, %c0_16], %32 {strides = array<i32>} : memref<1x64x128xf32, #tpu.memory_space<vmem>>, vector<1x64x128xf32>,
    return
  }
  func.func @transform_0(%arg0: i32, %arg1: i32) -> (i32, i32, i32) {
    %c0_i32 = arith.constant 0 : i32
    %c0_i32_0 = arith.constant 0 : i32
    return %arg0, %c0_i32, %arg1 : i32, i32, i32
  }
  func.func @transform_1(%arg0: i32, %arg1: i32) -> (i32, i32) {
    %c0_i32 = arith.constant 0 : i32
    %c0_i32_0 = arith.constant 0 : i32
    %c0_i32_1 = arith.constant 0 : i32
    return %c0_i32, %c0_i32_0 : i32, i32
  }
  func.func @transform_2(%arg0: i32, %arg1: i32) -> (i32, i32) {
    %c0_i32 = arith.constant 0 : i32
    %c0_i32_0 = arith.constant 0 : i32
    %c0_i32_1 = arith.constant 0 : i32
    return %c0_i32, %c0_i32_0 : i32, i32
  }
  func.func @transform_3(%arg0: i32, %arg1: i32) -> (i32, i32, i32) {
    %c0_i32 = arith.constant 0 : i32
    %c0_i32_0 = arith.constant 0 : i32
    return %arg0, %c0_i32, %arg1 : i32, i32, i32
  }
}

</mosaic_0001>

<llo_original>
// kernel: tpu_custom_call.1
$region0: #{tpu_custom_call.1}
  #allocation0 [shape = 'u32[]', space=smem, size = 0x4, offset = 0x4, fixed_abs, tag = 'smem constant byte address 0x4 - core index']
  #allocation1 [shape = 'u32[144,128]{1,0:T(1,128)}', space=vmem, size = 0x12000, scoped, tag = 'internal scratch']
  %s0 = inlined_call_operand.hbm [shape: f32[2,64,200], index: 0, kind: input, shape index: {}]
  %s1 = inlined_call_operand.vmem [shape: f32[64,1], index: 1, kind: input, shape index: {}]
  %s2 = inlined_call_operand.vmem [shape: f32[64,1], index: 2, kind: input, shape index: {}]
  %s3 = inlined_call_operand.hbm [shape: f32[2,64,200], index: 3, kind: output, shape index: {}]
  %s4 = sld [smem:[#allocation0]]
  $region49: #{tpu_custom_call.1} parent=0
    _
  %s6 = ssub.s32 1, %s4
  %s7 = scalar_select 0, %s6, %s4
  $region1: #{tpu_custom_call.1} parent=0
    #allocation2 [shape = 'u8[65536]{0}', space=vmem, size = 0x10000, scoped, tag = 'input window, operand 0']
    #allocation3 [shape = 's32[2]{0}', space=sflag, size = 0x8, scoped, tag = 'scoped memory for tpu_custom_call.1']
    #allocation4 [shape = 's32[2]{0}', space=sflag, size = 0x8, scoped, tag = 'scoped memory for tpu_custom_call.1']
    #allocation5 [shape = 'u8[65536]{0}', space=vmem, size = 0x10000, scoped, tag = 'output window, operand 0']
    %8 = vsyncpa [#allocation3], 0
    %s9 = scalar_lea.sflag [#allocation3], 1
    %10 = vsyncpa %s9, 0
    %11 = vsyncpa [#allocation4], 0
    %s12 = scalar_lea.sflag [#allocation4], 1
    %13 = vsyncpa %s12, 0
    loop: start=0, step=1, limit=6
    $region2: #{tpu_custom_call.1} parent=1 // loop_pre_header
      _
    $region3: #{tpu_custom_call.1} parent=1 // loop_header
      %s15 = sphi 0, %s19
      %p16 = scmp.ge.s32.totalorder %s15, 6
      %s22 = sphi 0, %s34
      %s23 = sphi 0, %s30
      %s24 = sphi 0, %s22
      %s25 = sphi 0, %s23
      %s26 = sphi 0, %s24
      %s27 = sphi 0, %s25
      %s39 = sphi 0, %s41
      %s42 = sphi 0, %s39
      %s43 = sphi 0, %s42
      %s59 = sphi 0, %s43
      %s63 = sphi 0, %s63
      %s65 = sphi 0, %s63
      %s66 = sphi 0, %s65
      %s80 = sphi 0, %s66
      %s84 = sphi 0, %s84
      %s86 = sphi 0, %s84
      %s87 = sphi 0, %s86
      %s101 = sphi 0, %s87
      %s109 = sphi 0, %s111
      %s112 = sphi 0, %s109
      %s113 = sphi 0, %s112
      %s129 = sphi 0, %s113
    $region4: #{tpu_custom_call.1} parent=1 // loop_header_branch
      %18 = sbr.rel (%p16) target = $region8
    $region5: #{tpu_custom_call.1} parent=1 // loop_body
      %s20 = ssub.s32 %s15, 1
      %s21 = ssub.s32 %s15, 2
      %s28 = sadd.s32 1, %s23
      %p29 = scmp.ge.s32.totalorder %s28, 2
      %s30 = scalar_select %p29, 0, %s28
      %s31 = sadd.s32 1, %s22
      %s32 = scalar_select %p29, %s31, %s22
      %p33 = scmp.ge.s32.totalorder %s32, 2
      %s34 = scalar_select %p33, 0, %s32
      %s35 = ssub.s32 %s22, %s34
      %s36 = ssub.s32 %s23, %s30
      %s37 = sor.u32 %s35, %s36
      %p38 = scmp.eq.s32.totalorder %s37, 0
      %s40 = sadd.s32 %s39, 1
      %s41 = scalar_select %p38, %s39, %s40
      %p44 = pneg %p38
      %p45 = scmp.eq.s32.totalorder %s15, 3
      %p46 = por %p44, %p45
      %p47 = scmp.ne.s32.totalorder %s39, %s42
      %p48 = scmp.eq.s32.totalorder %s15, 0
      %p49 = por %p47, %p48
      %p50 = scmp.ne.s32.totalorder %s39, %s42
      %p51 = scmp.eq.s32.totalorder %s20, 3
      %p52 = por %p50, %p51
      %p53 = scmp.ne.s32.totalorder %s42, %s43
      %p54 = scmp.eq.s32.totalorder %s20, 0
      %p55 = por %p53, %p54
      %p56 = scmp.ne.s32.totalorder %s42, %s43
      %p57 = scmp.eq.s32.totalorder %s21, 3
      %p58 = por %p56, %p57
      %p60 = scmp.ne.s32.totalorder %s43, %s59
      %p61 = scmp.eq.s32.totalorder %s21, 0
      %p62 = por %p60, %p61
      %s64 = sadd.s32 %s63, 1
      %p67 = scmp.eq.s32.totalorder %s15, 3
      %p68 = scmp.ne.s32.totalorder %s63, %s65
      %p69 = scmp.eq.s32.totalorder %s15, 0
      %p70 = por %p68, %p69
      %p71 = scmp.ne.s32.totalorder %s63, %s65
      %p72 = scmp.eq.s32.totalorder %s20, 3
      %p73 = por %p71, %p72
      %p74 = scmp.ne.s32.totalorder %s65, %s66
      %p75 = scmp.eq.s32.totalorder %s20, 0
      %p76 = por %p74, %p75
      %p77 = scmp.ne.s32.totalorder %s65, %s66
      %p78 = scmp.eq.s32.totalorder %s21, 3
      %p79 = por %p77, %p78
      %p81 = scmp.ne.s32.totalorder %s66, %s80
      %p82 = scmp.eq.s32.totalorder %s21, 0
      %p83 = por %p81, %p82
      %s85 = sadd.s32 %s84, 1
      %p88 = scmp.eq.s32.totalorder %s15, 3
      %p89 = scmp.ne.s32.totalorder %s84, %s86
      %p90 = scmp.eq.s32.totalorder %s15, 0
      %p91 = por %p89, %p90
      %p92 = scmp.ne.s32.totalorder %s84, %s86
      %p93 = scmp.eq.s32.totalorder %s20, 3
      %p94 = por %p92, %p93
      %p95 = scmp.ne.s32.totalorder %s86, %s87
      %p96 = scmp.eq.s32.totalorder %s20, 0
      %p97 = por %p95, %p96
      %p98 = scmp.ne.s32.totalorder %s86, %s87
      %p99 = scmp.eq.s32.totalorder %s21, 3
      %p100 = por %p98, %p99
      %p102 = scmp.ne.s32.totalorder %s87, %s101
      %p103 = scmp.eq.s32.totalorder %s21, 0
      %p104 = por %p102, %p103
      %s105 = ssub.s32 %s22, %s34
      %s106 = ssub.s32 %s23, %s30
      %s107 = sor.u32 %s105, %s106
      %p108 = scmp.eq.s32.totalorder %s107, 0
      %s110 = sadd.s32 %s109, 1
      %s111 = scalar_select %p108, %s109, %s110
      %p114 = pneg %p108
      %p115 = scmp.eq.s32.totalorder %s15, 3
      %p116 = por %p114, %p115
      %p117 = scmp.ne.s32.totalorder %s109, %s112
      %p118 = scmp.eq.s32.totalorder %s15, 0
      %p119 = por %p117, %p118
      %p120 = scmp.ne.s32.totalorder %s109, %s112
      %p121 = scmp.eq.s32.totalorder %s20, 3
      %p122 = por %p120, %p121
      %p123 = scmp.ne.s32.totalorder %s112, %s113
      %p124 = scmp.eq.s32.totalorder %s20, 0
      %p125 = por %p123, %p124
      %p126 = scmp.ne.s32.totalorder %s112, %s113
      %p127 = scmp.eq.s32.totalorder %s21, 3
      %p128 = por %p126, %p127
      %p130 = scmp.ne.s32.totalorder %s113, %s129
      %p131 = scmp.eq.s32.totalorder %s21, 0
      %p132 = por %p130, %p131
      %p133 = scmp.le.s32.totalorder 1, %s15
      %p134 = scmp.lt.s32.totalorder %s15, 5
      %p135 = pnand %p133, %p134
      %p136 = pneg %p135
      // Predicated region
      $region9: #{tpu_custom_call.1} parent=5 // pred_check
        _
      $region10: #{tpu_custom_call.1} parent=5 // pred_check_branch
        %138 = sbr.rel (%p135) target = $region12
      $region11: #{tpu_custom_call.1} parent=5 // pred_region
        %s139 = ssub.s32 %s15, 1
        // Predicated region
        $region13: #{tpu_custom_call.1} parent=11 // pred_check
          %p140 = pneg %p76
        $region14: #{tpu_custom_call.1} parent=11 // pred_check_branch
          %142 = sbr.rel (%p140) target = $region16
        $region15: #{tpu_custom_call.1} parent=11 // pred_region
          _
        $region16: #{tpu_custom_call.1} parent=11 // pred_fallthru
          _
        // Predicated region
        $region17: #{tpu_custom_call.1} parent=11 // pred_check
          %p143 = pneg %p97
        $region18: #{tpu_custom_call.1} parent=11 // pred_check_branch
          %145 = sbr.rel (%p143) target = $region20
        $region19: #{tpu_custom_call.1} parent=11 // pred_region
          _
        $region20: #{tpu_custom_call.1} parent=11 // pred_fallthru
          _
      $region12: #{tpu_custom_call.1} parent=5 // pred_fallthru
        _
      %p146 = scmp.lt.s32.totalorder %s15, 4
      // Predicated region
      $region21: #{tpu_custom_call.1} parent=5 // pred_check
        %p147 = pneg %p146
      $region22: #{tpu_custom_call.1} parent=5 // pred_check_branch
        %149 = sbr.rel (%p147) target = $region24
      $region23: #{tpu_custom_call.1} parent=5 // pred_region
        // Predicated region
        $region25: #{tpu_custom_call.1} parent=23 // pred_check
          %p150 = pneg %p49
        $region26: #{tpu_custom_call.1} parent=23 // pred_check_branch
          %152 = sbr.rel (%p150) target = $region28
        $region27: #{tpu_custom_call.1} parent=23 // pred_region
          %s153 = sand.u32 %s39, 1
          %s154 = scalar_lea.sflag [#allocation3], %s153
          %s155 = sand.u32 %s39, 1
          %s156 = smul.addr %s155, 64
          %s157 = scalar_lea.vmem [#allocation2], %s156
          %s159 = ssub.s32 1024, 1024
          %160 = vsyncadd %s154, %s159
          %s161 = smul.addr %s22, 16
          %s162 = sadd.s32 %s23, %s161
          %s163 = smul.addr %s162, 128
          %s164 = scalar_lea.hbm %s0, %s163
          %s165 = sshll.u32 %s157, 4
          %s166 = int_to_ptr.vmem [resolvable:$true] %s165
          %171 = dma.hbm_to_vmem [thread:$0]  %s164, 1024, %s166, %s154, 256, 128, 8
        $region28: #{tpu_custom_call.1} parent=23 // pred_fallthru
          _
      $region24: #{tpu_custom_call.1} parent=5 // pred_fallthru
        _
      %p172 = scmp.le.s32.totalorder 1, %s15
      %p173 = scmp.lt.s32.totalorder %s15, 5
      %p174 = pnand %p172, %p173
      %p175 = pneg %p174
      // Predicated region
      $region29: #{tpu_custom_call.1} parent=5 // pred_check
        _
      $region30: #{tpu_custom_call.1} parent=5 // pred_check_branch
        %177 = sbr.rel (%p174) target = $region32
      $region31: #{tpu_custom_call.1} parent=5 // pred_region
        %s178 = ssub.s32 %s15, 1
        %s179 = sand.u32 %s42, 1
        %s180 = scalar_lea.sflag [#allocation3], %s179
        %s181 = sand.u32 %s42, 1
        %s182 = smul.addr %s181, 64
        %s183 = scalar_lea.vmem [#allocation2], %s182
        // Predicated region
        $region33: #{tpu_custom_call.1} parent=31 // pred_check
          %p184 = pneg %p55
        $region34: #{tpu_custom_call.1} parent=31 // pred_check_branch
          %186 = sbr.rel (%p184) target = $region36
        $region35: #{tpu_custom_call.1} parent=31 // pred_region
          %187 = dma.done %s180, 1024
        $region36: #{tpu_custom_call.1} parent=31 // pred_fallthru
          _
        %s188 = sand.u32 %s42, 1
        %s189 = scalar_lea.sflag [#allocation3], %s188
        %s190 = sand.u32 %s42, 1
        %s191 = smul.addr %s190, 64
        %s192 = scalar_lea.vmem [#allocation2], %s191
        %p193 = pneg %p55
        %p194 = pneg %p52
        %p195 = pneg %p76
        %p196 = pneg %p73
        %p197 = pneg %p97
        %p198 = pneg %p94
        %p199 = pneg %p125
        %p200 = pneg %p122
        %s201 = sand.u32 %s112, 1
        %s202 = scalar_lea.sflag [#allocation4], %s201
        %s203 = sand.u32 %s112, 1
        %s204 = smul.addr %s203, 64
        %s205 = scalar_lea.vmem [#allocation5], %s204
        %v206 = vld [vmem:[%s183] sm:$0xff]
        %v207 = vld [vmem:[%s183 + $0x8] sm:$0xff]
        %v208 = vld [vmem:[%s183 + $0x10] sm:$0xff]
        %v209 = vld [vmem:[%s183 + $0x18] sm:$0xff]
        %v210 = vld [vmem:[%s183 + $0x20] sm:$0xff]
        %v211 = vld [vmem:[%s183 + $0x28] sm:$0xff]
        %v212 = vld [vmem:[%s183 + $0x30] sm:$0xff]
        %v213 = vld [vmem:[%s183 + $0x38] sm:$0xff]
        %v214 = vadd.f32 %v206, %v207
        %v215 = vadd.f32 %v214, %v208
        %v216 = vadd.f32 %v215, %v209
        %v217 = vadd.f32 %v216, %v210
        %v218 = vadd.f32 %v217, %v211
        %v219 = vadd.f32 %v218, %v212
        %v220 = vadd.f32 %v219, %v213
        %v221 = vrot.slane %v220, 4
        %v222 = vadd.f32 %v220, %v221
        %v223 = vrot.slane %v222, 2
        %v224 = vadd.f32 %v222, %v223
        %v225 = vrot.slane %v224, 1
        %v226 = vadd.f32 %v224, %v225
        %v227 = vmul.f32 %v206, %v206
        %v228 = vmul.f32 %v207, %v207
        %v229 = vmul.f32 %v208, %v208
        %v230 = vmul.f32 %v209, %v209
        %v231 = vmul.f32 %v210, %v210
        %v232 = vmul.f32 %v211, %v211
        %v233 = vmul.f32 %v212, %v212
        %v234 = vmul.f32 %v213, %v213
        %v235 = vadd.f32 %v227, %v228
        %v236 = vadd.f32 %v235, %v229
        %v237 = vadd.f32 %v236, %v230
        %v238 = vadd.f32 %v237, %v231
        %v239 = vadd.f32 %v238, %v232
        %v240 = vadd.f32 %v239, %v233
        %v241 = vadd.f32 %v240, %v234
        %v242 = vrot.slane %v241, 4
        %v243 = vadd.f32 %v241, %v242
        %v244 = vrot.slane %v243, 2
        %v245 = vadd.f32 %v243, %v244
        %v246 = vrot.slane %v245, 1
        %v247 = vadd.f32 %v245, %v246
        %v248 = vmul.f32 %v226, 0.015625
        %v249 = vmul.f32 %v247, 0.015625
        %v250 = vmul.f32 %v248, %v248
        %v251 = vsub.f32 %v249, %v250
        %v252 = vmax.f32 %v251, 0.0
        %v253 = vadd.f32 %v252, 1e-05
        %v254 = vrsqrt.pop %v253
        %v255 = vld [vmem:[%s1] sm:$0xff]
        %v256 = vld [vmem:[%s1 + $0x8] sm:$0xff]
        %v257 = vld [vmem:[%s1 + $0x10] sm:$0xff]
        %v258 = vld [vmem:[%s1 + $0x18] sm:$0xff]
        %v259 = vld [vmem:[%s1 + $0x20] sm:$0xff]
        %v260 = vld [vmem:[%s1 + $0x28] sm:$0xff]
        %v261 = vld [vmem:[%s1 + $0x30] sm:$0xff]
        %v262 = vld [vmem:[%s1 + $0x38] sm:$0xff]
        %v263 = vld [vmem:[%s2] sm:$0xff]
        %v264 = vld [vmem:[%s2 + $0x8] sm:$0xff]
        %v265 = vld [vmem:[%s2 + $0x10] sm:$0xff]
        %v266 = vld [vmem:[%s2 + $0x18] sm:$0xff]
        %v267 = vld [vmem:[%s2 + $0x20] sm:$0xff]
        %v268 = vld [vmem:[%s2 + $0x28] sm:$0xff]
        %v269 = vld [vmem:[%s2 + $0x30] sm:$0xff]
        %v270 = vld [vmem:[%s2 + $0x38] sm:$0xff]
        %v271 = vsub.f32 %v206, %v248
        %v272 = vsub.f32 %v207, %v248
        %v273 = vsub.f32 %v208, %v248
        %v274 = vsub.f32 %v209, %v248
        %v275 = vsub.f32 %v210, %v248
        %v276 = vsub.f32 %v211, %v248
        %v277 = vsub.f32 %v212, %v248
        %v278 = vsub.f32 %v213, %v248
        %v279 = vmul.f32 %v271, %v254
        %v280 = vmul.f32 %v272, %v254
        %v281 = vmul.f32 %v273, %v254
        %v282 = vmul.f32 %v274, %v254
        %v283 = vmul.f32 %v275, %v254
        %v284 = vmul.f32 %v276, %v254
        %v285 = vmul.f32 %v277, %v254
        %v286 = vmul.f32 %v278, %v254
        %288 = vset.pattern.permute.xlu0 0
        %289 = vperm.xlu0 %288, %v255
        %v290 = vpop.permute.xlu0 %289
        %293 = vset.pattern.permute.xlu0 0
        %294 = vperm.xlu0 %293, %v256
        %v295 = vpop.permute.xlu0 %294
        %298 = vset.pattern.permute.xlu0 0
        %299 = vperm.xlu0 %298, %v257
        %v300 = vpop.permute.xlu0 %299
        %303 = vset.pattern.permute.xlu0 0
        %304 = vperm.xlu0 %303, %v258
        %v305 = vpop.permute.xlu0 %304
        %308 = vset.pattern.permute.xlu0 0
        %309 = vperm.xlu0 %308, %v259
        %v310 = vpop.permute.xlu0 %309
        %313 = vset.pattern.permute.xlu0 0
        %314 = vperm.xlu0 %313, %v260
        %v315 = vpop.permute.xlu0 %314
        %318 = vset.pattern.permute.xlu0 0
        %319 = vperm.xlu0 %318, %v261
        %v320 = vpop.permute.xlu0 %319
        %323 = vset.pattern.permute.xlu0 0
        %324 = vperm.xlu0 %323, %v262
        %v325 = vpop.permute.xlu0 %324
        %v327 = vmul.f32 %v279, %v290
        %v328 = vmul.f32 %v280, %v295
        %v329 = vmul.f32 %v281, %v300
        %v330 = vmul.f32 %v282, %v305
        %v331 = vmul.f32 %v283, %v310
        %v332 = vmul.f32 %v284, %v315
        %v333 = vmul.f32 %v285, %v320
        %v334 = vmul.f32 %v286, %v325
        %336 = vset.pattern.permute.xlu0 0
        %337 = vperm.xlu0 %336, %v263
        %v338 = vpop.permute.xlu0 %337
        %341 = vset.pattern.permute.xlu0 0
        %342 = vperm.xlu0 %341, %v264
        %v343 = vpop.permute.xlu0 %342
        %346 = vset.pattern.permute.xlu0 0
        %347 = vperm.xlu0 %346, %v265
        %v348 = vpop.permute.xlu0 %347
        %351 = vset.pattern.permute.xlu0 0
        %352 = vperm.xlu0 %351, %v266
        %v353 = vpop.permute.xlu0 %352
        %356 = vset.pattern.permute.xlu0 0
        %357 = vperm.xlu0 %356, %v267
        %v358 = vpop.permute.xlu0 %357
        %361 = vset.pattern.permute.xlu0 0
        %362 = vperm.xlu0 %361, %v268
        %v363 = vpop.permute.xlu0 %362
        %366 = vset.pattern.permute.xlu0 0
        %367 = vperm.xlu0 %366, %v269
        %v368 = vpop.permute.xlu0 %367
        %371 = vset.pattern.permute.xlu0 0
        %372 = vperm.xlu0 %371, %v270
        %v373 = vpop.permute.xlu0 %372
        %v375 = vadd.f32 %v327, %v338
        %v376 = vadd.f32 %v328, %v343
        %v377 = vadd.f32 %v329, %v348
        %v378 = vadd.f32 %v330, %v353
        %v379 = vadd.f32 %v331, %v358
        %v380 = vadd.f32 %v332, %v363
        %v381 = vadd.f32 %v333, %v368
        %v382 = vadd.f32 %v334, %v373
        %383 = vst [vmem:[%s205] sm:$0xff] %v375
        %384 = vst [vmem:[%s205 + $0x8] sm:$0xff] %v376
        %385 = vst [vmem:[%s205 + $0x10] sm:$0xff] %v377
        %386 = vst [vmem:[%s205 + $0x18] sm:$0xff] %v378
        %387 = vst [vmem:[%s205 + $0x20] sm:$0xff] %v379
        %388 = vst [vmem:[%s205 + $0x28] sm:$0xff] %v380
        %389 = vst [vmem:[%s205 + $0x30] sm:$0xff] %v381
        %390 = vst [vmem:[%s205 + $0x38] sm:$0xff] %v382
        %s391 = sand.u32 %s112, 1
        %s392 = scalar_lea.sflag [#allocation4], %s391
        %s393 = sand.u32 %s112, 1
        %s394 = smul.addr %s393, 64
        %s395 = scalar_lea.vmem [#allocation5], %s394
        // Predicated region
        $region37: #{tpu_custom_call.1} parent=31 // pred_check
          %p396 = pneg %p122
        $region38: #{tpu_custom_call.1} parent=31 // pred_check_branch
          %398 = sbr.rel (%p396) target = $region40
        $region39: #{tpu_custom_call.1} parent=31 // pred_region
          %s400 = ssub.s32 1024, 1024
          %401 = vsyncadd %s392, %s400
          %s402 = smul.addr %s24, 16
          %s403 = sadd.s32 %s25, %s402
          %s404 = smul.addr %s403, 128
          %s405 = scalar_lea.hbm %s3, %s404
          %s406 = sshll.u32 %s395, 4
          %s407 = int_to_ptr.vmem [resolvable:$true] %s406
          %412 = dma.vmem_to_hbm [thread:$0]  %s407, 1024, %s405, %s392, 128, 256, 8
        $region40: #{tpu_custom_call.1} parent=31 // pred_fallthru
          _
      $region32: #{tpu_custom_call.1} parent=5 // pred_fallthru
        _
      %p413 = scmp.le.s32.totalorder 2, %s15
      // Predicated region
      $region41: #{tpu_custom_call.1} parent=5 // pred_check
        %p414 = pneg %p413
      $region42: #{tpu_custom_call.1} parent=5 // pred_check_branch
        %416 = sbr.rel (%p414) target = $region44
      $region43: #{tpu_custom_call.1} parent=5 // pred_region
        %s417 = ssub.s32 %s15, 2
        // Predicated region
        $region45: #{tpu_custom_call.1} parent=43 // pred_check
          %p418 = pneg %p128
        $region46: #{tpu_custom_call.1} parent=43 // pred_check_branch
          %420 = sbr.rel (%p418) target = $region48
        $region47: #{tpu_custom_call.1} parent=43 // pred_region
          %s421 = sand.u32 %s113, 1
          %s422 = scalar_lea.sflag [#allocation4], %s421
          %s423 = sand.u32 %s113, 1
          %s424 = smul.addr %s423, 64
          %s425 = scalar_lea.vmem [#allocation5], %s424
          %426 = dma.done %s422, 1024
        $region48: #{tpu_custom_call.1} parent=43 // pred_fallthru
          _
      $region44: #{tpu_custom_call.1} parent=5 // pred_fallthru
        _
    $region6: #{tpu_custom_call.1} parent=1 // loop_footer
      %s19 = sadd.s32 1, %s15
    $region7: #{tpu_custom_call.1} parent=1 // loop_footer_branch
      %14 = sbr.rel target = $region3
    $region8: #{tpu_custom_call.1} parent=1 // loop_exit
      _
    %427 = vsyncpa [#allocation3], 1
    %s428 = scalar_lea.sflag [#allocation3], 1
    %429 = vsyncpa %s428, 1
    %430 = vsyncpa [#allocation4], 1
    %s431 = scalar_lea.sflag [#allocation4], 1
    %432 = vsyncpa %s431, 1

</llo_original>
